<compile_context>
chip_gen: v7x
topology: tpu7x:2x2x1
jax: 0.10.0
libtpu: 0.0.40
codegen_flags: <defaults>
</compile_context>

<pallas_src>
import functools

import jax
import jax.numpy as jnp
from jax import lax
from jax.experimental import pallas as pl
from jax.experimental.pallas import tpu as pltpu

EPS = 1e-6  # OpenNMT LayerNorm epsilon (PyTorch nn.LayerNorm default would be 1e-5)


def _layernorm_f32(x, gamma, beta):
    # x: [tm, d] f32, gamma/beta: [1, d] f32
    mean = jnp.mean(x, axis=-1, keepdims=True)
    var = jnp.mean((x - mean) ** 2, axis=-1, keepdims=True)
    return (x - mean) * lax.rsqrt(var + EPS) * gamma + beta


def fused_encoder_kernel(x_ref, g_ref, bt_ref, fg_ref, fb_ref,
                         w1_ref, b1_ref, w2_ref, b2_ref,
                         o_ref, acc_ref,
                         *, num_layers, weights_resident, ff_chunk):
    """grid = (row_tiles, num_layers); layer axis innermost ("arbitrary").

    acc_ref ([tm, d_model] f32 VMEM scratch) holds the residual stream, resident across
    the layer axis.  Step l applies one FFN sublayer; the final LayerNorm is fused into
    the last step (l == num_layers - 1), which also writes the output block.
    """
    l = pl.program_id(1)

    @pl.when(l == 0)
    def _():
        acc_ref[...] = x_ref[...].astype(jnp.float32)

    x = acc_ref[...]                                   # f32 residual stream
    gamma = g_ref[l].astype(jnp.float32)               # (1, d_model)
    beta = bt_ref[l].astype(jnp.float32)               # (1, d_model)
    ln = _layernorm_f32(x, gamma, beta).astype(jnp.bfloat16)

    b1 = b1_ref[l].astype(jnp.float32)                 # (1, d_ff)
    b2 = b2_ref[l].astype(jnp.float32)                 # (1, d_model)
    d_ff = b1.shape[-1]
    d_model = x.shape[-1]

    # FFN sublayer: W2 @ relu(W1 @ LN(x) + b1) + b2 + x
    # bf16 MXU matmuls with f32 accumulation; biases / residual stay f32.
    if weights_resident:
        # w1_ref: [L, d, f], w2_ref: [L, f, d] bf16, VMEM-resident across the whole grid.
        h = jnp.dot(ln, w1_ref[l], preferred_element_type=jnp.float32)
        h = jnp.maximum(h + b1, 0.0)
        y = jnp.dot(h.astype(jnp.bfloat16), w2_ref[l],
                    preferred_element_type=jnp.float32)
    elif ff_chunk >= d_ff:
        # Streamed per-layer weights, unchunked.
        h = jnp.dot(ln, w1_ref[...], preferred_element_type=jnp.float32)
        h = jnp.maximum(h + b1, 0.0)
        y = jnp.dot(h.astype(jnp.bfloat16), w2_ref[...],
                    preferred_element_type=jnp.float32)
    else:
        # Streamed weights with d_ff blocking: bounds the live [tm, ff_chunk]
        # intermediate (f32 + bf16 copies) without extra HBM traffic.
        n_chunks = d_ff // ff_chunk

        def chunk_body(c, y_acc):
            off = pl.multiple_of(c * ff_chunk, ff_chunk)
            w1c = w1_ref[:, pl.ds(off, ff_chunk)]
            w2c = w2_ref[pl.ds(off, ff_chunk), :]
            b1c = lax.dynamic_slice_in_dim(b1, off, ff_chunk, axis=1)
            hc = jnp.dot(ln, w1c, preferred_element_type=jnp.float32)
            hc = jnp.maximum(hc + b1c, 0.0)
            return y_acc + jnp.dot(hc.astype(jnp.bfloat16), w2c,
                                   preferred_element_type=jnp.float32)

        y = lax.fori_loop(0, n_chunks, chunk_body,
                          jnp.zeros((x.shape[0], d_model), jnp.float32))

    new_x = y + b2 + x
    acc_ref[...] = new_x

    @pl.when(l == num_layers - 1)
    def _():
        fg = fg_ref[...].astype(jnp.float32)
        fb = fb_ref[...].astype(jnp.float32)
        o_ref[...] = _layernorm_f32(new_x, fg, fb).astype(o_ref.dtype)


# ----------------------------- wrapper / tiling policy -----------------------------

def _round_up(x, m):
    return ((x + m - 1) // m) * m


def _vmem_capacity_bytes():
    try:
        return int(pltpu.get_tpu_info().vmem_capacity_bytes)
    except Exception:
        return 64 * 1024 * 1024   # conservative fallback (v7x per-TC VMEM)


def _pick_ff_chunk(tm, d_ff, weights_resident, cap_bytes=8 * 1024 * 1024):
    # Bound the live [tm, ff_chunk] f32 + bf16 intermediate (~6 B/elem).
    if weights_resident or tm * d_ff * 6 <= cap_bytes:
        return d_ff
    for c in (2048, 1024, 512, 256, 128):
        if c < d_ff and d_ff % c == 0 and tm * c * 6 <= cap_bytes:
            return c
    return d_ff


def _working_set_bytes(tm, d_model, d_ff, ff_chunk, num_layers,
                       act_itemsize, out_itemsize, weights_resident):
    est = 2 * tm * d_model * act_itemsize            # x blocks (double-buffered)
    est += 2 * tm * d_model * out_itemsize           # out blocks (double-buffered)
    est += tm * d_model * 4                          # residual-stream scratch
    if weights_resident:
        est += 2 * num_layers * 2 * d_model * d_ff * 2   # resident bf16 W1+W2 (2x reservation)
    else:
        est += 2 * 2 * d_model * d_ff * 2                # streamed per-layer W1+W2 (2 buffers)
    # tiny params (sublane-padded 1 -> 8), double-buffered
    est += 2 * 8 * 4 * (num_layers * (3 * d_model + d_ff) + 2 * d_model)
    est += tm * ff_chunk * 6                         # h f32 + h bf16
    est += tm * d_model * 10                         # ln bf16 + y / new_x f32 temporaries
    est += 2 * 1024 * 1024                           # compiler scratch / spill slack
    return est


def _choose_tm(n, d_model, d_ff, num_layers, act_itemsize, out_itemsize,
               weights_resident, budget, capacity):
    n8 = max(8, _round_up(n, 8))
    # Streamed weights are re-fetched per row tile -> arithmetic intensity is ~tm
    # flop/byte of weight traffic.  v6e (128 MiB VMEM, ~680 flop/B balance) wants
    # tm ~768; v7x/v5e are fine at ~512.  Resident weights are MXU-bound regardless.
    target = 512 if (weights_resident or capacity <= 96 * 1024 * 1024) else 768
    cands = {c for c in (1024, 768, 512, 384, 256, 128) if c <= target}
    if n8 <= target:
        cands.add(n8)                                # exact single tile for small inputs
    fallback = None
    for tm in sorted(cands, reverse=True):
        if tm > n8:
            continue
        ffc = _pick_ff_chunk(tm, d_ff, weights_resident)
        if _working_set_bytes(tm, d_model, d_ff, ffc, num_layers,
                              act_itemsize, out_itemsize, weights_resident) > budget:
            continue
        if fallback is None:
            fallback = tm                            # largest tile that fits VMEM
        n_pad = _round_up(n, tm)
        if (n_pad - n) <= max(0.10 * n, tm // 8):    # keep padding waste ~<=10%
            return tm
    if fallback is not None:
        return fallback
    return min(128, n8)


def transformer_encoder(out, layer_params, final_ln, *,
                        tm=None, weights_resident=None, ff_chunk=None):
    """out: [seq_len, batch, d_model] (graph_embed=None path). Returns (encoded, attn)."""
    seq_len, batch, d_model = out.shape
    num_layers = len(layer_params)
    assert num_layers >= 1, "TransformerEncoder requires num_layers >= 1"
    d_ff = layer_params[0]["w1"].shape[-1]

    n = seq_len * batch
    x = out.reshape(n, d_model)
    act_itemsize = x.dtype.itemsize
    out_itemsize = out.dtype.itemsize

    # Stack per-layer parameters once; matmul weights go bf16 (MXU-native),
    # LayerNorm params / biases / residual stay f32.
    w1 = jnp.stack([p["w1"] for p in layer_params]).astype(jnp.bfloat16)             # [L, d, f]
    w2 = jnp.stack([p["w2"] for p in layer_params]).astype(jnp.bfloat16)             # [L, f, d]
    b1 = jnp.stack([p["b1"].reshape(1, d_ff) for p in layer_params]
                   ).astype(jnp.float32)                                             # [L, 1, f]
    b2 = jnp.stack([p["b2"].reshape(1, d_model) for p in layer_params]
                   ).astype(jnp.float32)                                             # [L, 1, d]
    gamma = jnp.stack([p["ln_gamma"].reshape(1, d_model) for p in layer_params]
                      ).astype(jnp.float32)                                          # [L, 1, d]
    beta = jnp.stack([p["ln_beta"].reshape(1, d_model) for p in layer_params]
                     ).astype(jnp.float32)                                           # [L, 1, d]
    fgamma = final_ln["ln_gamma"].reshape(1, d_model).astype(jnp.float32)
    fbeta = final_ln["ln_beta"].reshape(1, d_model).astype(jnp.float32)

    capacity = _vmem_capacity_bytes()
    budget = int(0.80 * capacity)

    if weights_resident is None:
        # Keep all layers' bf16 W1/W2 VMEM-resident when they fit with headroom
        # (counting the pipeline's 2x buffer reservation): removes per-row-tile weight
        # re-streaming and makes the kernel MXU-bound regardless of tm.
        weights_resident = (2 * num_layers * 2 * d_model * d_ff * 2) <= budget // 2

    if tm is None:
        tm = _choose_tm(n, d_model, d_ff, num_layers, act_itemsize, out_itemsize,
                        weights_resident, budget, capacity)
    tm = max(8, min(_round_up(tm, 8), _round_up(n, 8)))

    if ff_chunk is None:
        ff_chunk = _pick_ff_chunk(tm, d_ff, weights_resident)
    if ff_chunk <= 0 or d_ff % ff_chunk != 0:
        ff_chunk = d_ff

    n_pad = _round_up(n, tm)
    if n_pad != n:
        x = jnp.pad(x, ((0, n_pad - n), (0, 0)))

    est = _working_set_bytes(tm, d_model, d_ff, ff_chunk, num_layers,
                             act_itemsize, out_itemsize, weights_resident)
    vmem_limit = int(min(0.85 * capacity, max(1.25 * est, 32 * 1024 * 1024)))

    if weights_resident:
        w1_spec = pl.BlockSpec((num_layers, d_model, d_ff), lambda i, l: (0, 0, 0))
        w2_spec = pl.BlockSpec((num_layers, d_ff, d_model), lambda i, l: (0, 0, 0))
    else:
        w1_spec = pl.BlockSpec((None, d_model, d_ff), lambda i, l: (l, 0, 0))
        w2_spec = pl.BlockSpec((None, d_ff, d_model), lambda i, l: (l, 0, 0))

    kernel = functools.partial(fused_encoder_kernel, num_layers=num_layers,
                               weights_resident=weights_resident, ff_chunk=ff_chunk)

    y = pl.pallas_call(
        kernel,
        out_shape=jax.ShapeDtypeStruct((n_pad, d_model), out.dtype),
        grid_spec=pltpu.PrefetchScalarGridSpec(
            num_scalar_prefetch=0,
            grid=(n_pad // tm, num_layers),
            in_specs=[
                pl.BlockSpec((tm, d_model), lambda i, l: (i, 0)),                    # x
                pl.BlockSpec((num_layers, 1, d_model), lambda i, l: (0, 0, 0)),      # gamma
                pl.BlockSpec((num_layers, 1, d_model), lambda i, l: (0, 0, 0)),      # beta
                pl.BlockSpec((1, d_model), lambda i, l: (0, 0)),                     # final gamma
                pl.BlockSpec((1, d_model), lambda i, l: (0, 0)),                     # final beta
                w1_spec,                                                             # W1
                pl.BlockSpec((num_layers, 1, d_ff), lambda i, l: (0, 0, 0)),         # b1
                w2_spec,                                                             # W2
                pl.BlockSpec((num_layers, 1, d_model), lambda i, l: (0, 0, 0)),      # b2
            ],
            out_specs=pl.BlockSpec((tm, d_model), lambda i, l: (i, 0)),
            scratch_shapes=[pltpu.VMEM((tm, d_model), jnp.float32)],
        ),
        compiler_params=pltpu.CompilerParams(
            dimension_semantics=("parallel", "arbitrary"),
            vmem_limit_bytes=vmem_limit,
        ),
    )(x, gamma, beta, fgamma, fbeta, w1, b1, w2, b2)

    attn = None  # graph_embed is None -> context_attn branch skipped, attn stays None
    return y[:n].reshape(seq_len, batch, d_model), attn


# ----------------------------- parameters & references -----------------------------

def init_params(key, num_layers, d_model, d_ff, dtype=jnp.float32):
    params = []
    for _ in range(num_layers):
        key, k1, k2, k3, k4, k5, k6 = jax.random.split(key, 7)
        params.append(dict(
            ln_gamma=1.0 + 0.1 * jax.random.normal(k5, (1, d_model), dtype),
            ln_beta=0.1 * jax.random.normal(k6, (1, d_model), dtype),
            w1=jax.random.normal(k1, (d_model, d_ff), dtype) * (1.0 / d_model ** 0.5),
            b1=0.1 * jax.random.normal(k3, (1, d_ff), dtype),
            w2=jax.random.normal(k2, (d_ff, d_model), dtype) * (1.0 / d_ff ** 0.5),
            b2=0.1 * jax.random.normal(k4, (1, d_model), dtype),
        ))
    key, k7, k8 = jax.random.split(key, 3)
    final = dict(ln_gamma=1.0 + 0.1 * jax.random.normal(k7, (1, d_model), dtype),
                 ln_beta=0.1 * jax.random.normal(k8, (1, d_model), dtype))
    return params, final


def _ln_ref(v, g, b):
    m = jnp.mean(v, -1, keepdims=True)
    var = jnp.mean((v - m) ** 2, -1, keepdims=True)
    return (v - m) * lax.rsqrt(var + EPS) * g + b


def reference_encoder_f32(out, layer_params, final_ln):
    """Pure-f32 reference (exact PyTorch math)."""
    x = out.reshape(-1, out.shape[-1]).astype(jnp.float32)
    for p in layer_params:
        h = jnp.maximum(_ln_ref(x, p["ln_gamma"], p["ln_beta"]) @ p["w1"] + p["b1"], 0.0)
        x = h @ p["w2"] + p["b2"] + x
    x = _ln_ref(x, final_ln["ln_gamma"], final_ln["ln_beta"])
    return x.reshape(out.shape)


def reference_encoder_bf16_matmul(out, layer_params, final_ln):
    """Reference matching the kernel's precision: bf16 matmul inputs, f32 accumulation."""
    x = out.reshape(-1, out.shape[-1]).astype(jnp.float32)
    for p in layer_params:
        ln = _ln_ref(x, p["ln_gamma"], p["ln_beta"]).astype(jnp.bfloat16)
        h = jnp.dot(ln, p["w1"].astype(jnp.bfloat16),
                    preferred_element_type=jnp.float32) + p["b1"]
        h = jnp.maximum(h, 0.0)
        y = jnp.dot(h.astype(jnp.bfloat16), p["w2"].astype(jnp.bfloat16),
                    preferred_element_type=jnp.float32)
        x = y + p["b2"] + x
    x = _ln_ref(x, final_ln["ln_gamma"], final_ln["ln_beta"])
    return x.reshape(out.shape)


if __name__ == "__main__":
    num_layers, d_model, d_ff = 2, 128, 256   # lane-dense d_model (multiple of 128)
    seq_len, batch = 8, 2

    key = jax.random.PRNGKey(0)
    key, kx = jax.random.split(key)
    out_in = jax.random.normal(kx, (seq_len, batch, d_model), jnp.float32)
    layer_params, final_ln = init_params(key, num_layers, d_model, d_ff)

    ref_matched = reference_encoder_bf16_matmul(out_in, layer_params, final_ln)
    ref_f32 = reference_encoder_f32(out_in, layer_params, final_ln)

    # Default (auto) config: weights are VMEM-resident at this size.
    encoded, attn = transformer_encoder(out_in, layer_params, final_ln)
    encoded = jax.block_until_ready(encoded)
    assert encoded.shape == (seq_len, batch, d_model)
    assert attn is None
    assert jnp.allclose(encoded, ref_matched, atol=1e-2, rtol=1e-2), \
        "mismatch vs matched-precision reference (resident path)"
    assert jnp.allclose(encoded, ref_f32, atol=1e-1, rtol=1e-1), \
        "mismatch vs f32 reference (loose, bf16-matmul tolerance)"

    # Also exercise the streamed-weight + d_ff-chunked path used for large models.
    encoded2, _ = transformer_encoder(out_in, layer_params, final_ln,
                                      weights_resident=False, ff_chunk=128)
    encoded2 = jax.block_until_ready(encoded2)
    assert jnp.allclose(encoded2, ref_matched, atol=1e-2, rtol=1e-2), \
        "mismatch vs matched-precision reference (streamed/chunked path)"

    print("KERNEL_OK")
</pallas_src>

<mosaic_0001>
module attributes {stable_mosaic.version = 11 : i64} {
  func.func @fused_encoder_kernel(%arg0: i32, %arg1: i32, %arg2: memref<16x128xf32, #tpu.memory_space<vmem>>, %arg3: memref<2x1x128xf32, #tpu.memory_space<vmem>>, %arg4: memref<2x1x128xf32, #tpu.memory_space<vmem>>, %arg5: memref<1x128xf32, #tpu.memory_space<vmem>>, %arg6: memref<1x128xf32, #tpu.memory_space<vmem>>, %arg7: memref<2x128x256xbf16, #tpu.memory_space<vmem>>, %arg8: memref<2x1x256xf32, #tpu.memory_space<vmem>>, %arg9: memref<2x256x128xbf16, #tpu.memory_space<vmem>>, %arg10: memref<2x1x128xf32, #tpu.memory_space<vmem>>, %arg11: memref<16x128xf32, #tpu.memory_space<vmem>>, %arg12: memref<16x128xf32, #tpu.memory_space<vmem>>) attributes {dimension_semantics = [#tpu.dimension_semantics<parallel>, #tpu.dimension_semantics<arbitrary>], iteration_bounds = array<i64: 1, 2>, scalar_prefetch = 0 : i64, scratch_operands = 1 : i64, tpu.core_type = #tpu.core_type<tc>, window_params = [{transform_indices = @transform_0, window_bounds = array<i64: 16, 128>}, {pipeline_mode = #tpu.pipeline_mode<synchronous>, transform_indices = @transform_1, window_bounds = array<i64: 2, 1, 128>}, {pipeline_mode = #tpu.pipeline_mode<synchronous>, transform_indices = @transform_2, window_bounds = array<i64: 2, 1, 128>}, {pipeline_mode = #tpu.pipeline_mode<synchronous>, transform_indices = @transform_3, window_bounds = array<i64: 1, 128>}, {pipeline_mode = #tpu.pipeline_mode<synchronous>, transform_indices = @transform_4, window_bounds = array<i64: 1, 128>}, {pipeline_mode = #tpu.pipeline_mode<synchronous>, transform_indices = @transform_5, window_bounds = array<i64: 2, 128, 256>}, {pipeline_mode = #tpu.pipeline_mode<synchronous>, transform_indices = @transform_6, window_bounds = array<i64: 2, 1, 256>}, {pipeline_mode = #tpu.pipeline_mode<synchronous>, transform_indices = @transform_7, window_bounds = array<i64: 2, 256, 128>}, {pipeline_mode = #tpu.pipeline_mode<synchronous>, transform_indices = @transform_8, window_bounds = array<i64: 2, 1, 128>}, {transform_indices = @transform_9, window_bounds = array<i64: 16, 128>}]} {
    %c0_i32 = arith.constant 0 : i32
    %0 = arith.cmpi eq, %arg1, %c0_i32 : i32
    %1 = arith.extui %0 : i1 to i32
    %c0_i32_0 = arith.constant 0 : i32
    %2 = arith.cmpi ne, %1, %c0_i32_0 : i32
    scf.if %2 {
      %c0_24 = arith.constant 0 : index
      %c0_25 = arith.constant 0 : index
      %59 = vector.load %arg2[%c0_24, %c0_25] : memref<16x128xf32, #tpu.memory_space<vmem>>, vector<16x128xf32>
      %c0_26 = arith.constant 0 : index
      %c0_27 = arith.constant 0 : index
      %60 = vector.load %arg12[%c0_26, %c0_27] : memref<16x128xf32, #tpu.memory_space<vmem>>, vector<16x128xf32>
      tpu.vector_store %arg12[%c0_26, %c0_27], %59 {strides = array<i32>} : memref<16x128xf32, #tpu.memory_space<vmem>>, vector<16x128xf32>,
    } else {
    }
    %c0 = arith.constant 0 : index
    %c0_1 = arith.constant 0 : index
    %3 = vector.load %arg12[%c0, %c0_1] : memref<16x128xf32, #tpu.memory_space<vmem>>, vector<16x128xf32>
    %4 = arith.index_cast %arg1 : i32 to index
    %c0_2 = arith.constant 0 : index
    %c0_3 = arith.constant 0 : index
    %5 = vector.load %arg3[%4, %c0_2, %c0_3] : memref<2x1x128xf32, #tpu.memory_space<vmem>>, vector<1x1x128xf32>
    %6 = vector.shape_cast %5 : vector<1x1x128xf32> to vector<1x128xf32>
    %7 = arith.index_cast %arg1 : i32 to index
    %c0_4 = arith.constant 0 : index
    %c0_5 = arith.constant 0 : index
    %8 = vector.load %arg4[%7, %c0_4, %c0_5] : memref<2x1x128xf32, #tpu.memory_space<vmem>>, vector<1x1x128xf32>
    %9 = vector.shape_cast %8 : vector<1x1x128xf32> to vector<1x128xf32>
    %cst = arith.constant dense<0.000000e+00> : vector<16xf32>
    %10 = vector.multi_reduction <add>, %3, %cst [1] : vector<16x128xf32> to vector<16xf32>
    %11 = vector.shape_cast %10 : vector<16xf32> to vector<16x1xf32>
    %cst_6 = arith.constant 1.280000e+02 : f32
    %12 = vector.broadcast %cst_6 : f32 to vector<16x1xf32>
    %13 = arith.divf %11, %12 : vector<16x1xf32>
    %14 = vector.broadcast %13 : vector<16x1xf32> to vector<16x128xf32>
    %15 = arith.subf %3, %14 : vector<16x128xf32>
    %16 = arith.mulf %15, %15 : vector<16x128xf32>
    %cst_7 = arith.constant dense<0.000000e+00> : vector<16xf32>
    %17 = vector.multi_reduction <add>, %16, %cst_7 [1] : vector<16x128xf32> to vector<16xf32>
    %18 = vector.shape_cast %17 : vector<16xf32> to vector<16x1xf32>
    %cst_8 = arith.constant 1.280000e+02 : f32
    %19 = vector.broadcast %cst_8 : f32 to vector<16x1xf32>
    %20 = arith.divf %18, %19 : vector<16x1xf32>
    %21 = vector.broadcast %13 : vector<16x1xf32> to vector<16x128xf32>
    %22 = arith.subf %3, %21 : vector<16x128xf32>
    %cst_9 = arith.constant 9.99999997E-7 : f32
    %23 = vector.broadcast %cst_9 : f32 to vector<16x1xf32>
    %24 = arith.addf %20, %23 : vector<16x1xf32>
    %25 = math.rsqrt %24 : vector<16x1xf32>
    %26 = vector.broadcast %25 : vector<16x1xf32> to vector<16x128xf32>
    %27 = arith.mulf %22, %26 : vector<16x128xf32>
    %28 = vector.broadcast %6 : vector<1x128xf32> to vector<16x128xf32>
    %29 = arith.mulf %27, %28 : vector<16x128xf32>
    %30 = vector.broadcast %9 : vector<1x128xf32> to vector<16x128xf32>
    %31 = arith.addf %29, %30 : vector<16x128xf32>
    %32 = arith.truncf %31 : vector<16x128xf32> to vector<16x128xbf16>
    %33 = arith.index_cast %arg1 : i32 to index
    %c0_10 = arith.constant 0 : index
    %c0_11 = arith.constant 0 : index
    %34 = vector.load %arg8[%33, %c0_10, %c0_11] : memref<2x1x256xf32, #tpu.memory_space<vmem>>, vector<1x1x256xf32>
    %35 = vector.shape_cast %34 : vector<1x1x256xf32> to vector<1x256xf32>
    %36 = arith.index_cast %arg1 : i32 to index
    %c0_12 = arith.constant 0 : index
    %c0_13 = arith.constant 0 : index
    %37 = vector.load %arg10[%36, %c0_12, %c0_13] : memref<2x1x128xf32, #tpu.memory_space<vmem>>, vector<1x1x128xf32>
    %38 = vector.shape_cast %37 : vector<1x1x128xf32> to vector<1x128xf32>
    %39 = arith.index_cast %arg1 : i32 to index
    %c0_14 = arith.constant 0 : index
    %c0_15 = arith.constant 0 : index
    %40 = vector.load %arg7[%39, %c0_14, %c0_15] : memref<2x128x256xbf16, #tpu.memory_space<vmem>>, vector<1x128x256xbf16>
    %41 = vector.shape_cast %40 : vector<1x128x256xbf16> to vector<128x256xbf16>
    %cst_16 = arith.constant dense<0.000000e+00> : vector<16x256xf32>
    %42 = tpu.matmul %32, %41, %cst_16 {dimension_numbers = #tpu.dot_dimension_numbers<[1], [0], [0], [1], [0, 0, 1, 1], [], []>} : vector<16x128xbf16>, vector<128x256xbf16>, vector<16x256xf32> -> vector<16x256xf32>
    %43 = vector.broadcast %35 : vector<1x256xf32> to vector<16x256xf32>
    %44 = arith.addf %42, %43 : vector<16x256xf32>
    %cst_17 = arith.constant 0.000000e+00 : f32
    %45 = vector.broadcast %cst_17 : f32 to vector<16x256xf32>
    %46 = arith.maximumf %44, %45 : vector<16x256xf32>
    %47 = arith.truncf %46 : vector<16x256xf32> to vector<16x256xbf16>
    %48 = arith.index_cast %arg1 : i32 to index
    %c0_18 = arith.constant 0 : index
    %c0_19 = arith.constant 0 : index
    %49 = vector.load %arg9[%48, %c0_18, %c0_19] : memref<2x256x128xbf16, #tpu.memory_space<vmem>>, vector<1x256x128xbf16>
    %50 = vector.shape_cast %49 : vector<1x256x128xbf16> to vector<256x128xbf16>
    %cst_20 = arith.constant dense<0.000000e+00> : vector<16x128xf32>
    %51 = tpu.matmul %47, %50, %cst_20 {dimension_numbers = #tpu.dot_dimension_numbers<[1], [0], [0], [1], [0, 0, 1, 1], [], []>} : vector<16x256xbf16>, vector<256x128xbf16>, vector<16x128xf32> -> vector<16x128xf32>
    %52 = vector.broadcast %38 : vector<1x128xf32> to vector<16x128xf32>
    %53 = arith.addf %51, %52 : vector<16x128xf32>
    %54 = arith.addf %53, %3 : vector<16x128xf32>
    %c0_21 = arith.constant 0 : index
    %c0_22 = arith.constant 0 : index
    %55 = vector.load %arg12[%c0_21, %c0_22] : memref<16x128xf32, #tpu.memory_space<vmem>>, vector<16x128xf32>
    tpu.vector_store %arg12[%c0_21, %c0_22], %54 {strides = array<i32>} : memref<16x128xf32, #tpu.memory_space<vmem>>, vector<16x128xf32>,
    %c1_i32 = arith.constant 1 : i32
    %56 = arith.cmpi eq, %arg1, %c1_i32 : i32
    %57 = arith.extui %56 : i1 to i32
    %c0_i32_23 = arith.constant 0 : i32
    %58 = arith.cmpi ne, %57, %c0_i32_23 : i32
    scf.if %58 {
      %c0_24 = arith.constant 0 : index
      %c0_25 = arith.constant 0 : index
      %59 = vector.load %arg5[%c0_24, %c0_25] : memref<1x128xf32, #tpu.memory_space<vmem>>, vector<1x128xf32>
      %c0_26 = arith.constant 0 : index
      %c0_27 = arith.constant 0 : index
      %60 = vector.load %arg6[%c0_26, %c0_27] : memref<1x128xf32, #tpu.memory_space<vmem>>, vector<1x128xf32>
      %cst_28 = arith.constant dense<0.000000e+00> : vector<16xf32>
      %61 = vector.multi_reduction <add>, %54, %cst_28 [1] : vector<16x128xf32> to vector<16xf32>
      %62 = vector.shape_cast %61 : vector<16xf32> to vector<16x1xf32>
      %cst_29 = arith.constant 1.280000e+02 : f32
      %63 = vector.broadcast %cst_29 : f32 to vector<16x1xf32>
      %64 = arith.divf %62, %63 : vector<16x1xf32>
      %65 = vector.broadcast %64 : vector<16x1xf32> to vector<16x128xf32>
      %66 = arith.subf %54, %65 : vector<16x128xf32>
      %67 = arith.mulf %66, %66 : vector<16x128xf32>
      %cst_30 = arith.constant dense<0.000000e+00> : vector<16xf32>
      %68 = vector.multi_reduction <add>, %67, %cst_30 [1] : vector<16x128xf32> to vector<16xf32>
      %69 = vector.shape_cast %68 : vector<16xf32> to vector<16x1xf32>
      %cst_31 = arith.constant 1.280000e+02 : f32
      %70 = vector.broadcast %cst_31 : f32 to vector<16x1xf32>
      %71 = arith.divf %69, %70 : vector<16x1xf32>
      %72 = vector.broadcast %64 : vector<16x1xf32> to vector<16x128xf32>
      %73 = arith.subf %54, %72 : vector<16x128xf32>
      %cst_32 = arith.constant 9.99999997E-7 : f32
      %74 = vector.broadcast %cst_32 : f32 to vector<16x1xf32>
      %75 = arith.addf %71, %74 : vector<16x1xf32>
      %76 = math.rsqrt %75 : vector<16x1xf32>
      %77 = vector.broadcast %76 : vector<16x1xf32> to vector<16x128xf32>
      %78 = arith.mulf %73, %77 : vector<16x128xf32>
      %79 = vector.broadcast %59 : vector<1x128xf32> to vector<16x128xf32>
      %80 = arith.mulf %78, %79 : vector<16x128xf32>
      %81 = vector.broadcast %60 : vector<1x128xf32> to vector<16x128xf32>
      %82 = arith.addf %80, %81 : vector<16x128xf32>
      %c0_33 = arith.constant 0 : index
      %c0_34 = arith.constant 0 : index
      %83 = vector.load %arg11[%c0_33, %c0_34] : memref<16x128xf32, #tpu.memory_space<vmem>>, vector<16x128xf32>
      tpu.vector_store %arg11[%c0_33, %c0_34], %82 {strides = array<i32>} : memref<16x128xf32, #tpu.memory_space<vmem>>, vector<16x128xf32>,
    } else {
    }
    return
  }
  func.func @transform_0(%arg0: i32, %arg1: i32) -> (i32, i32) {
    %c0_i32 = arith.constant 0 : i32
    %c0_i32_0 = arith.constant 0 : i32
    return %arg0, %c0_i32 : i32, i32
  }
  func.func @transform_1(%arg0: i32, %arg1: i32) -> (i32, i32, i32) {
    %c0_i32 = arith.constant 0 : i32
    %c0_i32_0 = arith.constant 0 : i32
    %c0_i32_1 = arith.constant 0 : i32
    %c0_i32_2 = arith.constant 0 : i32
    return %c0_i32, %c0_i32_0, %c0_i32_1 : i32, i32, i32
  }
  func.func @transform_2(%arg0: i32, %arg1: i32) -> (i32, i32, i32) {
    %c0_i32 = arith.constant 0 : i32
    %c0_i32_0 = arith.constant 0 : i32
    %c0_i32_1 = arith.constant 0 : i32
    %c0_i32_2 = arith.constant 0 : i32
    return %c0_i32, %c0_i32_0, %c0_i32_1 : i32, i32, i32
  }
  func.func @transform_3(%arg0: i32, %arg1: i32) -> (i32, i32) {
    %c0_i32 = arith.constant 0 : i32
    %c0_i32_0 = arith.constant 0 : i32
    %c0_i32_1 = arith.constant 0 : i32
    return %c0_i32, %c0_i32_0 : i32, i32
  }
  func.func @transform_4(%arg0: i32, %arg1: i32) -> (i32, i32) {
    %c0_i32 = arith.constant 0 : i32
    %c0_i32_0 = arith.constant 0 : i32
    %c0_i32_1 = arith.constant 0 : i32
    return %c0_i32, %c0_i32_0 : i32, i32
  }
  func.func @transform_5(%arg0: i32, %arg1: i32) -> (i32, i32, i32) {
    %c0_i32 = arith.constant 0 : i32
    %c0_i32_0 = arith.constant 0 : i32
    %c0_i32_1 = arith.constant 0 : i32
    %c0_i32_2 = arith.constant 0 : i32
    return %c0_i32, %c0_i32_0, %c0_i32_1 : i32, i32, i32
  }
  func.func @transform_6(%arg0: i32, %arg1: i32) -> (i32, i32, i32) {
    %c0_i32 = arith.constant 0 : i32
    %c0_i32_0 = arith.constant 0 : i32
    %c0_i32_1 = arith.constant 0 : i32
    %c0_i32_2 = arith.constant 0 : i32
    return %c0_i32, %c0_i32_0, %c0_i32_1 : i32, i32, i32
  }
  func.func @transform_7(%arg0: i32, %arg1: i32) -> (i32, i32, i32) {
    %c0_i32 = arith.constant 0 : i32
    %c0_i32_0 = arith.constant 0 : i32
    %c0_i32_1 = arith.constant 0 : i32
    %c0_i32_2 = arith.constant 0 : i32
    return %c0_i32, %c0_i32_0, %c0_i32_1 : i32, i32, i32
  }
  func.func @transform_8(%arg0: i32, %arg1: i32) -> (i32, i32, i32) {
    %c0_i32 = arith.constant 0 : i32
    %c0_i32_0 = arith.constant 0 : i32
    %c0_i32_1 = arith.constant 0 : i32
    %c0_i32_2 = arith.constant 0 : i32
    return %c0_i32, %c0_i32_0, %c0_i32_1 : i32, i32, i32
  }
  func.func @transform_9(%arg0: i32, %arg1: i32) -> (i32, i32) {
    %c0_i32 = arith.constant 0 : i32
    %c0_i32_0 = arith.constant 0 : i32
    return %arg0, %c0_i32 : i32, i32
  }
}

</mosaic_0001>

<llo_original>
// kernel: tpu_custom_call.1
$region0: #{tpu_custom_call.1}
  #allocation0 [shape = 'u32[]', space=smem, size = 0x4, offset = 0x4, fixed_abs, tag = 'smem constant byte address 0x4 - core index']
  #allocation1 [shape = 'u32[144,128]{1,0:T(1,128)}', space=vmem, size = 0x12000, scoped, tag = 'internal scratch']
  #allocation2 [shape = 'f32[16,128]{1,0:T(8,128)}', space=vmem, size = 0x2000, scoped, tag = 'scratch operand']
  %s0 = inlined_call_operand.hbm [shape: f32[16,128], index: 0, kind: input, shape index: {}]
  %s1 = inlined_call_operand.vmem [shape: f32[2,1,128], index: 1, kind: input, shape index: {}]
  %s2 = inlined_call_operand.hbm [shape: f32[2,1,128], index: 2, kind: input, shape index: {}]
  %s3 = inlined_call_operand.vmem [shape: f32[1,128], index: 3, kind: input, shape index: {}]
  %s4 = inlined_call_operand.vmem [shape: f32[1,128], index: 4, kind: input, shape index: {}]
  %s5 = inlined_call_operand.hbm [shape: bf16[2,128,256], index: 5, kind: input, shape index: {}]
  %s6 = inlined_call_operand.vmem [shape: f32[2,1,256], index: 6, kind: input, shape index: {}]
  %s7 = inlined_call_operand.hbm [shape: bf16[2,256,128], index: 7, kind: input, shape index: {}]
  %s8 = inlined_call_operand.vmem [shape: f32[2,1,128], index: 8, kind: input, shape index: {}]
  %s9 = inlined_call_operand.hbm [shape: f32[16,128], index: 9, kind: output, shape index: {}]
  %s10 = sld [smem:[#allocation0]]
  $region93: #{tpu_custom_call.1} parent=0
    _
  %s12 = ssub.s32 1, %s10
  %s13 = scalar_select 0, %s12, %s10
  $region1: #{tpu_custom_call.1} parent=0
    #allocation3 [shape = 'u8[8192]{0}', space=vmem, size = 0x2000, scoped, tag = 'input window, operand 0, single buffered']
    #allocation4 [shape = 's32[2]{0}', space=sflag, size = 0x8, scoped, tag = 'scoped memory for tpu_custom_call.1']
    #allocation5 [shape = 's32[2]{0}', space=sflag, size = 0x8, scoped, tag = 'scoped memory for tpu_custom_call.1']
    #allocation6 [shape = 'u8[1024]{0}', space=vmem, size = 0x400, scoped, tag = 'input window, operand 2, single buffered']
    #allocation7 [shape = 's32[1]{0}', space=sflag, size = 0x4, scoped, tag = 'scoped memory for tpu_custom_call.1']
    #allocation8 [shape = 'u8[131072]{0}', space=vmem, size = 0x20000, scoped, tag = 'input window, operand 5, single buffered']
    #allocation9 [shape = 'u8[131072]{0}', space=vmem, size = 0x20000, scoped, tag = 'input window, operand 7, single buffered']
    #allocation10 [shape = 's32[1]{0}', space=sflag, size = 0x4, scoped, tag = 'scoped memory for tpu_custom_call.1']
    #allocation11 [shape = 'u8[8192]{0}', space=vmem, size = 0x2000, scoped, tag = 'output window, operand 0, single buffered']
    %14 = vsyncpa [#allocation4], 0
    %15 = vsyncpa [#allocation7], 0
    %16 = vsyncpa [#allocation10], 0
    %17 = vsyncpa [#allocation5], 0
    loop: start=0, step=1, limit=4
    $region2: #{tpu_custom_call.1} parent=1 // loop_pre_header
      _
    $region3: #{tpu_custom_call.1} parent=1 // loop_header
      %s19 = sphi 0, %s23
      %p20 = scmp.ge.s32.totalorder %s19, 4
      %s26 = sphi 0, %s38
      %s27 = sphi 0, %s34
      %s28 = sphi 0, %s26
      %s29 = sphi 0, %s27
      %s30 = sphi 0, %s28
      %s31 = sphi 0, %s29
      %s41 = sphi 0, %s43
      %s44 = sphi 0, %s41
      %s45 = sphi 0, %s44
      %s61 = sphi 0, %s45
      %s65 = sphi 0, %s65
      %s67 = sphi 0, %s65
      %s68 = sphi 0, %s67
      %s82 = sphi 0, %s68
      %s86 = sphi 0, %s86
      %s88 = sphi 0, %s86
      %s89 = sphi 0, %s88
      %s103 = sphi 0, %s89
      %s107 = sphi 0, %s107
      %s109 = sphi 0, %s107
      %s110 = sphi 0, %s109
      %s124 = sphi 0, %s110
      %s128 = sphi 0, %s128
      %s130 = sphi 0, %s128
      %s131 = sphi 0, %s130
      %s145 = sphi 0, %s131
      %s149 = sphi 0, %s149
      %s151 = sphi 0, %s149
      %s152 = sphi 0, %s151
      %s166 = sphi 0, %s152
      %s170 = sphi 0, %s170
      %s172 = sphi 0, %s170
      %s173 = sphi 0, %s172
      %s187 = sphi 0, %s173
      %s191 = sphi 0, %s191
      %s193 = sphi 0, %s191
      %s194 = sphi 0, %s193
      %s208 = sphi 0, %s194
      %s212 = sphi 0, %s212
      %s214 = sphi 0, %s212
      %s215 = sphi 0, %s214
      %s229 = sphi 0, %s215
      %s235 = sphi 0, %s237
      %s238 = sphi 0, %s235
      %s239 = sphi 0, %s238
      %s255 = sphi 0, %s239
    $region4: #{tpu_custom_call.1} parent=1 // loop_header_branch
      %22 = sbr.rel (%p20) target = $region8
    $region5: #{tpu_custom_call.1} parent=1 // loop_body
      %s24 = ssub.s32 %s19, 1
      %s25 = ssub.s32 %s19, 2
      %s32 = sadd.s32 1, %s27
      %p33 = scmp.ge.s32.totalorder %s32, 2
      %s34 = scalar_select %p33, 0, %s32
      %s35 = sadd.s32 1, %s26
      %s36 = scalar_select %p33, %s35, %s26
      %p37 = scmp.ge.s32.totalorder %s36, 1
      %s38 = scalar_select %p37, 0, %s36
      %s39 = ssub.s32 %s26, %s38
      %p40 = scmp.eq.s32.totalorder %s39, 0
      %s42 = sadd.s32 %s41, 1
      %s43 = scalar_select %p40, %s41, %s42
      %p46 = pneg %p40
      %p47 = scmp.eq.s32.totalorder %s19, 1
      %p48 = por %p46, %p47
      %p49 = scmp.ne.s32.totalorder %s41, %s44
      %p50 = scmp.eq.s32.totalorder %s19, 0
      %p51 = por %p49, %p50
      %p52 = scmp.ne.s32.totalorder %s41, %s44
      %p53 = scmp.eq.s32.totalorder %s24, 1
      %p54 = por %p52, %p53
      %p55 = scmp.ne.s32.totalorder %s44, %s45
      %p56 = scmp.eq.s32.totalorder %s24, 0
      %p57 = por %p55, %p56
      %p58 = scmp.ne.s32.totalorder %s44, %s45
      %p59 = scmp.eq.s32.totalorder %s25, 1
      %p60 = por %p58, %p59
      %p62 = scmp.ne.s32.totalorder %s45, %s61
      %p63 = scmp.eq.s32.totalorder %s25, 0
      %p64 = por %p62, %p63
      %s66 = sadd.s32 %s65, 1
      %p69 = scmp.eq.s32.totalorder %s19, 1
      %p70 = scmp.ne.s32.totalorder %s65, %s67
      %p71 = scmp.eq.s32.totalorder %s19, 0
      %p72 = por %p70, %p71
      %p73 = scmp.ne.s32.totalorder %s65, %s67
      %p74 = scmp.eq.s32.totalorder %s24, 1
      %p75 = por %p73, %p74
      %p76 = scmp.ne.s32.totalorder %s67, %s68
      %p77 = scmp.eq.s32.totalorder %s24, 0
      %p78 = por %p76, %p77
      %p79 = scmp.ne.s32.totalorder %s67, %s68
      %p80 = scmp.eq.s32.totalorder %s25, 1
      %p81 = por %p79, %p80
      %p83 = scmp.ne.s32.totalorder %s68, %s82
      %p84 = scmp.eq.s32.totalorder %s25, 0
      %p85 = por %p83, %p84
      %s87 = sadd.s32 %s86, 1
      %p90 = scmp.eq.s32.totalorder %s19, 1
      %p91 = scmp.ne.s32.totalorder %s86, %s88
      %p92 = scmp.eq.s32.totalorder %s19, 0
      %p93 = por %p91, %p92
      %p94 = scmp.ne.s32.totalorder %s86, %s88
      %p95 = scmp.eq.s32.totalorder %s24, 1
      %p96 = por %p94, %p95
      %p97 = scmp.ne.s32.totalorder %s88, %s89
      %p98 = scmp.eq.s32.totalorder %s24, 0
      %p99 = por %p97, %p98
      %p100 = scmp.ne.s32.totalorder %s88, %s89
      %p101 = scmp.eq.s32.totalorder %s25, 1
      %p102 = por %p100, %p101
      %p104 = scmp.ne.s32.totalorder %s89, %s103
      %p105 = scmp.eq.s32.totalorder %s25, 0
      %p106 = por %p104, %p105
      %s108 = sadd.s32 %s107, 1
      %p111 = scmp.eq.s32.totalorder %s19, 1
      %p112 = scmp.ne.s32.totalorder %s107, %s109
      %p113 = scmp.eq.s32.totalorder %s19, 0
      %p114 = por %p112, %p113
      %p115 = scmp.ne.s32.totalorder %s107, %s109
      %p116 = scmp.eq.s32.totalorder %s24, 1
      %p117 = por %p115, %p116
      %p118 = scmp.ne.s32.totalorder %s109, %s110
      %p119 = scmp.eq.s32.totalorder %s24, 0
      %p120 = por %p118, %p119
      %p121 = scmp.ne.s32.totalorder %s109, %s110
      %p122 = scmp.eq.s32.totalorder %s25, 1
      %p123 = por %p121, %p122
      %p125 = scmp.ne.s32.totalorder %s110, %s124
      %p126 = scmp.eq.s32.totalorder %s25, 0
      %p127 = por %p125, %p126
      %s129 = sadd.s32 %s128, 1
      %p132 = scmp.eq.s32.totalorder %s19, 1
      %p133 = scmp.ne.s32.totalorder %s128, %s130
      %p134 = scmp.eq.s32.totalorder %s19, 0
      %p135 = por %p133, %p134
      %p136 = scmp.ne.s32.totalorder %s128, %s130
      %p137 = scmp.eq.s32.totalorder %s24, 1
      %p138 = por %p136, %p137
      %p139 = scmp.ne.s32.totalorder %s130, %s131
      %p140 = scmp.eq.s32.totalorder %s24, 0
      %p141 = por %p139, %p140
      %p142 = scmp.ne.s32.totalorder %s130, %s131
      %p143 = scmp.eq.s32.totalorder %s25, 1
      %p144 = por %p142, %p143
      %p146 = scmp.ne.s32.totalorder %s131, %s145
      %p147 = scmp.eq.s32.totalorder %s25, 0
      %p148 = por %p146, %p147
      %s150 = sadd.s32 %s149, 1
      %p153 = scmp.eq.s32.totalorder %s19, 1
      %p154 = scmp.ne.s32.totalorder %s149, %s151
      %p155 = scmp.eq.s32.totalorder %s19, 0
      %p156 = por %p154, %p155
      %p157 = scmp.ne.s32.totalorder %s149, %s151
      %p158 = scmp.eq.s32.totalorder %s24, 1
      %p159 = por %p157, %p158
      %p160 = scmp.ne.s32.totalorder %s151, %s152
      %p161 = scmp.eq.s32.totalorder %s24, 0
      %p162 = por %p160, %p161
      %p163 = scmp.ne.s32.totalorder %s151, %s152
      %p164 = scmp.eq.s32.totalorder %s25, 1
      %p165 = por %p163, %p164
      %p167 = scmp.ne.s32.totalorder %s152, %s166
      %p168 = scmp.eq.s32.totalorder %s25, 0
      %p169 = por %p167, %p168
      %s171 = sadd.s32 %s170, 1
      %p174 = scmp.eq.s32.totalorder %s19, 1
      %p175 = scmp.ne.s32.totalorder %s170, %s172
      %p176 = scmp.eq.s32.totalorder %s19, 0
      %p177 = por %p175, %p176
      %p178 = scmp.ne.s32.totalorder %s170, %s172
      %p179 = scmp.eq.s32.totalorder %s24, 1
      %p180 = por %p178, %p179
      %p181 = scmp.ne.s32.totalorder %s172, %s173
      %p182 = scmp.eq.s32.totalorder %s24, 0
      %p183 = por %p181, %p182
      %p184 = scmp.ne.s32.totalorder %s172, %s173
      %p185 = scmp.eq.s32.totalorder %s25, 1
      %p186 = por %p184, %p185
      %p188 = scmp.ne.s32.totalorder %s173, %s187
      %p189 = scmp.eq.s32.totalorder %s25, 0
      %p190 = por %p188, %p189
      %s192 = sadd.s32 %s191, 1
      %p195 = scmp.eq.s32.totalorder %s19, 1
      %p196 = scmp.ne.s32.totalorder %s191, %s193
      %p197 = scmp.eq.s32.totalorder %s19, 0
      %p198 = por %p196, %p197
      %p199 = scmp.ne.s32.totalorder %s191, %s193
      %p200 = scmp.eq.s32.totalorder %s24, 1
      %p201 = por %p199, %p200
      %p202 = scmp.ne.s32.totalorder %s193, %s194
      %p203 = scmp.eq.s32.totalorder %s24, 0
      %p204 = por %p202, %p203
      %p205 = scmp.ne.s32.totalorder %s193, %s194
      %p206 = scmp.eq.s32.totalorder %s25, 1
      %p207 = por %p205, %p206
      %p209 = scmp.ne.s32.totalorder %s194, %s208
      %p210 = scmp.eq.s32.totalorder %s25, 0
      %p211 = por %p209, %p210
      %s213 = sadd.s32 %s212, 1
      %p216 = scmp.eq.s32.totalorder %s19, 1
      %p217 = scmp.ne.s32.totalorder %s212, %s214
      %p218 = scmp.eq.s32.totalorder %s19, 0
      %p219 = por %p217, %p218
      %p220 = scmp.ne.s32.totalorder %s212, %s214
      %p221 = scmp.eq.s32.totalorder %s24, 1
      %p222 = por %p220, %p221
      %p223 = scmp.ne.s32.totalorder %s214, %s215
      %p224 = scmp.eq.s32.totalorder %s24, 0
      %p225 = por %p223, %p224
      %p226 = scmp.ne.s32.totalorder %s214, %s215
      %p227 = scmp.eq.s32.totalorder %s25, 1
      %p228 = por %p226, %p227
      %p230 = scmp.ne.s32.totalorder %s215, %s229
      %p231 = scmp.eq.s32.totalorder %s25, 0
      %p232 = por %p230, %p231
      %s233 = ssub.s32 %s26, %s38
      %p234 = scmp.eq.s32.totalorder %s233, 0
      %s236 = sadd.s32 %s235, 1
      %s237 = scalar_select %p234, %s235, %s236
      %p240 = pneg %p234
      %p241 = scmp.eq.s32.totalorder %s19, 1
      %p242 = por %p240, %p241
      %p243 = scmp.ne.s32.totalorder %s235, %s238
      %p244 = scmp.eq.s32.totalorder %s19, 0
      %p245 = por %p243, %p244
      %p246 = scmp.ne.s32.totalorder %s235, %s238
      %p247 = scmp.eq.s32.totalorder %s24, 1
      %p248 = por %p246, %p247
      %p249 = scmp.ne.s32.totalorder %s238, %s239
      %p250 = scmp.eq.s32.totalorder %s24, 0
      %p251 = por %p249, %p250
      %p252 = scmp.ne.s32.totalorder %s238, %s239
      %p253 = scmp.eq.s32.totalorder %s25, 1
      %p254 = por %p252, %p253
      %p256 = scmp.ne.s32.totalorder %s239, %s255
      %p257 = scmp.eq.s32.totalorder %s25, 0
      %p258 = por %p256, %p257
      %p259 = scmp.le.s32.totalorder 1, %s19
      %p260 = scmp.lt.s32.totalorder %s19, 3
      %p261 = pnand %p259, %p260
      %p262 = pneg %p261
      // Predicated region
      $region9: #{tpu_custom_call.1} parent=5 // pred_check
        _
      $region10: #{tpu_custom_call.1} parent=5 // pred_check_branch
        %264 = sbr.rel (%p261) target = $region12
      $region11: #{tpu_custom_call.1} parent=5 // pred_region
        %s265 = ssub.s32 %s19, 1
        // Predicated region
        $region13: #{tpu_custom_call.1} parent=11 // pred_check
          %p266 = pneg %p57
        $region14: #{tpu_custom_call.1} parent=11 // pred_check_branch
          %268 = sbr.rel (%p266) target = $region16
        $region15: #{tpu_custom_call.1} parent=11 // pred_region
          %s269 = smul.u32 2, %s28
          %s271 = ssub.s32 256, 256
          %272 = vsyncadd [#allocation4], %s271
          %s273 = smul.addr %s269, 128
          %s274 = scalar_lea.hbm %s0, %s273
          %s275 = sshll.u32 [#allocation3], 4
          %s276 = int_to_ptr.vmem [resolvable:$true] %s275
          %281 = dma.hbm_to_vmem [thread:$0]  %s274, 256, %s276, [#allocation4], 128, 128, 8
        $region16: #{tpu_custom_call.1} parent=11 // pred_fallthru
          _
        // Predicated region
        $region17: #{tpu_custom_call.1} parent=11 // pred_check
          %p282 = pneg %p78
        $region18: #{tpu_custom_call.1} parent=11 // pred_check_branch
          %284 = sbr.rel (%p282) target = $region20
        $region19: #{tpu_custom_call.1} parent=11 // pred_region
          _
        $region20: #{tpu_custom_call.1} parent=11 // pred_fallthru
          _
        // Predicated region
        $region21: #{tpu_custom_call.1} parent=11 // pred_check
          %p285 = pneg %p99
        $region22: #{tpu_custom_call.1} parent=11 // pred_check_branch
          %287 = sbr.rel (%p285) target = $region24
        $region23: #{tpu_custom_call.1} parent=11 // pred_region
          %s289 = ssub.s32 32, 32
          %290 = vsyncadd [#allocation7], %s289
          %s291 = sshll.u32 [#allocation6], 4
          %s292 = int_to_ptr.vmem [resolvable:$true] %s291
          %297 = dma.hbm_to_vmem [thread:$0]  %s2, 32, %s292, [#allocation7], 16, 16, 1
        $region24: #{tpu_custom_call.1} parent=11 // pred_fallthru
          _
        // Predicated region
        $region25: #{tpu_custom_call.1} parent=11 // pred_check
          %p298 = pneg %p120
        $region26: #{tpu_custom_call.1} parent=11 // pred_check_branch
          %300 = sbr.rel (%p298) target = $region28
        $region27: #{tpu_custom_call.1} parent=11 // pred_region
          _
        $region28: #{tpu_custom_call.1} parent=11 // pred_fallthru
          _
        // Predicated region
        $region29: #{tpu_custom_call.1} parent=11 // pred_check
          %p301 = pneg %p141
        $region30: #{tpu_custom_call.1} parent=11 // pred_check_branch
          %303 = sbr.rel (%p301) target = $region32
        $region31: #{tpu_custom_call.1} parent=11 // pred_region
          _
        $region32: #{tpu_custom_call.1} parent=11 // pred_fallthru
          _
        // Predicated region
        $region33: #{tpu_custom_call.1} parent=11 // pred_check
          %p304 = pneg %p162
        $region34: #{tpu_custom_call.1} parent=11 // pred_check_branch
          %306 = sbr.rel (%p304) target = $region36
        $region35: #{tpu_custom_call.1} parent=11 // pred_region
          %s308 = ssub.s32 4096, 4096
          %309 = vsyncadd [#allocation7], %s308
          %s310 = sshll.u32 [#allocation8], 4
          %s311 = int_to_ptr.vmem [resolvable:$true] %s310
          %316 = dma.hbm_to_vmem [thread:$0]  %s5, 4096, %s311, [#allocation7], 128, 128, 8
        $region36: #{tpu_custom_call.1} parent=11 // pred_fallthru
          _
        // Predicated region
        $region37: #{tpu_custom_call.1} parent=11 // pred_check
          %p317 = pneg %p183
        $region38: #{tpu_custom_call.1} parent=11 // pred_check_branch
          %319 = sbr.rel (%p317) target = $region40
        $region39: #{tpu_custom_call.1} parent=11 // pred_region
          _
        $region40: #{tpu_custom_call.1} parent=11 // pred_fallthru
          _
        // Predicated region
        $region41: #{tpu_custom_call.1} parent=11 // pred_check
          %p320 = pneg %p204
        $region42: #{tpu_custom_call.1} parent=11 // pred_check_branch
          %322 = sbr.rel (%p320) target = $region44
        $region43: #{tpu_custom_call.1} parent=11 // pred_region
          %s324 = ssub.s32 4096, 4096
          %325 = vsyncadd [#allocation10], %s324
          %s326 = sshll.u32 [#allocation9], 4
          %s327 = int_to_ptr.vmem [resolvable:$true] %s326
          %332 = dma.hbm_to_vmem [thread:$0]  %s7, 4096, %s327, [#allocation10], 64, 64, 4
        $region44: #{tpu_custom_call.1} parent=11 // pred_fallthru
          _
        // Predicated region
        $region45: #{tpu_custom_call.1} parent=11 // pred_check
          %p333 = pneg %p225
        $region46: #{tpu_custom_call.1} parent=11 // pred_check_branch
          %335 = sbr.rel (%p333) target = $region48
        $region47: #{tpu_custom_call.1} parent=11 // pred_region
          _
        $region48: #{tpu_custom_call.1} parent=11 // pred_fallthru
          _
      $region12: #{tpu_custom_call.1} parent=5 // pred_fallthru
        _
      %p336 = scmp.lt.s32.totalorder %s19, 2
      // Predicated region
      $region49: #{tpu_custom_call.1} parent=5 // pred_check
        %p337 = pneg %p336
      $region50: #{tpu_custom_call.1} parent=5 // pred_check_branch
        %339 = sbr.rel (%p337) target = $region52
      $region51: #{tpu_custom_call.1} parent=5 // pred_region
        _
      $region52: #{tpu_custom_call.1} parent=5 // pred_fallthru
        _
      %p340 = scmp.le.s32.totalorder 1, %s19
      %p341 = scmp.lt.s32.totalorder %s19, 3
      %p342 = pnand %p340, %p341
      %p343 = pneg %p342
      // Predicated region
      $region53: #{tpu_custom_call.1} parent=5 // pred_check
        _
      $region54: #{tpu_custom_call.1} parent=5 // pred_check_branch
        %345 = sbr.rel (%p342) target = $region56
      $region55: #{tpu_custom_call.1} parent=5 // pred_region
        %s346 = ssub.s32 %s19, 1
        // Predicated region
        $region57: #{tpu_custom_call.1} parent=55 // pred_check
          %p347 = pneg %p57
        $region58: #{tpu_custom_call.1} parent=55 // pred_check_branch
          %349 = sbr.rel (%p347) target = $region60
        $region59: #{tpu_custom_call.1} parent=55 // pred_region
          %350 = dma.done [#allocation4], 256
        $region60: #{tpu_custom_call.1} parent=55 // pred_fallthru
          _
        // Predicated region
        $region61: #{tpu_custom_call.1} parent=55 // pred_check
          %p351 = pneg %p99
        $region62: #{tpu_custom_call.1} parent=55 // pred_check_branch
          %353 = sbr.rel (%p351) target = $region64
        $region63: #{tpu_custom_call.1} parent=55 // pred_region
          %354 = dma.done [#allocation7], 32
        $region64: #{tpu_custom_call.1} parent=55 // pred_fallthru
          _
        // Predicated region
        $region65: #{tpu_custom_call.1} parent=55 // pred_check
          %p355 = pneg %p162
        $region66: #{tpu_custom_call.1} parent=55 // pred_check_branch
          %357 = sbr.rel (%p355) target = $region68
        $region67: #{tpu_custom_call.1} parent=55 // pred_region
          %358 = dma.done [#allocation7], 4096
        $region68: #{tpu_custom_call.1} parent=55 // pred_fallthru
          _
        // Predicated region
        $region69: #{tpu_custom_call.1} parent=55 // pred_check
          %p359 = pneg %p204
        $region70: #{tpu_custom_call.1} parent=55 // pred_check_branch
          %361 = sbr.rel (%p359) target = $region72
        $region71: #{tpu_custom_call.1} parent=55 // pred_region
          %362 = dma.done [#allocation10], 4096
        $region72: #{tpu_custom_call.1} parent=55 // pred_fallthru
          _
        %p363 = pneg %p57
        %p364 = pneg %p54
        %p365 = pneg %p78
        %p366 = pneg %p75
        %p367 = pneg %p99
        %p368 = pneg %p96
        %p369 = pneg %p120
        %p370 = pneg %p117
        %p371 = pneg %p141
        %p372 = pneg %p138
        %p373 = pneg %p162
        %p374 = pneg %p159
        %p375 = pneg %p183
        %p376 = pneg %p180
        %p377 = pneg %p204
        %p378 = pneg %p201
        %p379 = pneg %p225
        %p380 = pneg %p222
        %p381 = pneg %p251
        %p382 = pneg %p248
        %s383 = smul.u32 2, %s28
        %s384 = smul.u32 2, %s28
        %p386 = scmp.eq.s32.totalorder %s29, 0
        // Predicated region
        $region73: #{tpu_custom_call.1} parent=55 // pred_check
          %p387 = pneg %p386
        $region74: #{tpu_custom_call.1} parent=55 // pred_check_branch
          %389 = sbr.rel (%p387) target = $region76
        $region75: #{tpu_custom_call.1} parent=55 // pred_region
          %v390 = vld [vmem:[#allocation3] sm:$0xff]
          %v391 = vld [vmem:[#allocation3 + $0x8] sm:$0xff]
          %392 = vst [vmem:[#allocation2] sm:$0xff] %v390
          %393 = vst [vmem:[#allocation2 + $0x8] sm:$0xff] %v391
        $region76: #{tpu_custom_call.1} parent=55 // pred_fallthru
          _
        %v394 = vld [vmem:[#allocation2] sm:$0xff]
        %v395 = vld [vmem:[#allocation2 + $0x8] sm:$0xff]
        %s396 = scalar_lea.vmem %s1, %s29
        %v397 = vld [vmem:[%s396] sm:$0x1]
        %s398 = scalar_lea.vmem [#allocation6], %s29
        %v399 = vld [vmem:[%s398] sm:$0x1]
        %400 = vadd.xlane.f32.xlu0 %v394
        %v401 = vpop.xlane.xlu0 %400
        %402 = vadd.xlane.f32.xlu0 %v395
        %v403 = vpop.xlane.xlu0 %402
        %v404 = vrcp.pop 128.0
        %v405 = vmul.f32 %v401, %v404
        %v406 = vmul.f32 %v403, %v404
        %v407 = vsub.f32 %v394, %v405
        %v408 = vsub.f32 %v395, %v406
        %v409 = vmul.f32 %v407, %v407
        %v410 = vmul.f32 %v408, %v408
        %411 = vadd.xlane.f32.xlu0 %v409
        %v412 = vpop.xlane.xlu0 %411
        %413 = vadd.xlane.f32.xlu0 %v410
        %v414 = vpop.xlane.xlu0 %413
        %v415 = vmul.f32 %v412, %v404
        %v416 = vmul.f32 %v414, %v404
        %v417 = vadd.f32 %v415, 1e-06
        %v418 = vadd.f32 %v416, 1e-06
        %v419 = vrsqrt.pop %v417
        %v420 = vrsqrt.pop %v418
        %v421 = vmul.f32 %v407, %v419
        %v422 = vmul.f32 %v408, %v420
        %v424 = vlaneseq
        %v425 = vshrl.u32 %v424, 7
        %v426 = vsub.s32 0, %v425
        %v427 = vrot.slane %v397, %v426
        %v429 = vmul.f32 %v421, %v427
        %v430 = vmul.f32 %v422, %v427
        %v432 = vlaneseq
        %v433 = vshrl.u32 %v432, 7
        %v434 = vsub.s32 0, %v433
        %v435 = vrot.slane %v399, %v434
        %v437 = vadd.f32 %v429, %v435
        %v438 = vadd.f32 %v430, %v435
        %v439 = vpack.c.bf16 %v438, %v437
        %s440 = smul.u32 %s29, 2
        %s441 = scalar_lea.vmem %s6, %s440
        %v442 = vld [vmem:[%s441] sm:$0x3]
        %s443 = scalar_lea.vmem %s8, %s29
        %v444 = vld [vmem:[%s443] sm:$0x1]
        %s445 = smul.u32 %s29, 32
        %s446 = smul.addr %s445, 4
        %s447 = scalar_lea.vmem [#allocation8], %s446
        %v448 = vld [vmem:[%s447] sm:$0xff]
        %v449 = vld [vmem:[%s447 + $0x8] sm:$0xff]
        %v450 = vld [vmem:[%s447 + $0x10] sm:$0xff]
        %v451 = vld [vmem:[%s447 + $0x18] sm:$0xff]
        %v452 = vld [vmem:[%s447 + $0x20] sm:$0xff]
        %v453 = vld [vmem:[%s447 + $0x28] sm:$0xff]
        %v454 = vld [vmem:[%s447 + $0x30] sm:$0xff]
        %v455 = vld [vmem:[%s447 + $0x38] sm:$0xff]
        %v456 = vld [vmem:[%s447 + $0x40] sm:$0xff]
        %v457 = vld [vmem:[%s447 + $0x48] sm:$0xff]
        %v458 = vld [vmem:[%s447 + $0x50] sm:$0xff]
        %v459 = vld [vmem:[%s447 + $0x58] sm:$0xff]
        %v460 = vld [vmem:[%s447 + $0x60] sm:$0xff]
        %v461 = vld [vmem:[%s447 + $0x68] sm:$0xff]
        %v462 = vld [vmem:[%s447 + $0x70] sm:$0xff]
        %v463 = vld [vmem:[%s447 + $0x78] sm:$0xff]
        %v465 = vlaneseq
        %v466 = vshrl.u32 %v465, 7
        %v467 = vsub.s32 0, %v466
        %v468 = vrot.slane %v442, %v467
        %v469 = vlaneseq
        %v470 = vshrl.u32 %v469, 7
        %v471 = vsub.s32 1, %v470
        %v472 = vrot.slane %v442, %v471
        %v491 = vunpack.c.l.b16 %v448
        %v492 = vunpack.c.h.b16 %v448
        %v493 = vunpack.c.l.b16 %v449
        %v494 = vunpack.c.h.b16 %v449
        %v495 = vunpack.c.l.b16 %v450
        %v496 = vunpack.c.h.b16 %v450
        %v497 = vunpack.c.l.b16 %v451
        %v498 = vunpack.c.h.b16 %v451
        %v499 = vunpack.c.l.b16 %v452
        %v500 = vunpack.c.h.b16 %v452
        %v501 = vunpack.c.l.b16 %v453
        %v502 = vunpack.c.h.b16 %v453
        %v503 = vunpack.c.l.b16 %v454
        %v504 = vunpack.c.h.b16 %v454
        %v505 = vunpack.c.l.b16 %v455
        %v506 = vunpack.c.h.b16 %v455
        %v507 = vunpack.c.l.b16 %v456
        %v508 = vunpack.c.h.b16 %v456
        %v509 = vunpack.c.l.b16 %v457
        %v510 = vunpack.c.h.b16 %v457
        %v511 = vunpack.c.l.b16 %v458
        %v512 = vunpack.c.h.b16 %v458
        %v513 = vunpack.c.l.b16 %v459
        %v514 = vunpack.c.h.b16 %v459
        %v515 = vunpack.c.l.b16 %v460
        %v516 = vunpack.c.h.b16 %v460
        %v517 = vunpack.c.l.b16 %v461
        %v518 = vunpack.c.h.b16 %v461
        %v519 = vunpack.c.l.b16 %v462
        %v520 = vunpack.c.h.b16 %v462
        %v521 = vunpack.c.l.b16 %v463
        %v522 = vunpack.c.h.b16 %v463
        %v523 = vpack.c.b16 %v493, %v491
        %v524 = vpack.c.b16 %v494, %v492
        %v525 = vpack.c.b16 %v497, %v495
        %v526 = vpack.c.b16 %v498, %v496
        %v527 = vpack.c.b16 %v501, %v499
        %v528 = vpack.c.b16 %v502, %v500
        %v529 = vpack.c.b16 %v505, %v503
        %v530 = vpack.c.b16 %v506, %v504
        %v531 = vpack.c.b16 %v509, %v507
        %v532 = vpack.c.b16 %v510, %v508
        %v533 = vpack.c.b16 %v513, %v511
        %v534 = vpack.c.b16 %v514, %v512
        %v535 = vpack.c.b16 %v517, %v515
        %v536 = vpack.c.b16 %v518, %v516
        %v537 = vpack.c.b16 %v521, %v519
        %v538 = vpack.c.b16 %v522, %v520
        %555 = vmatprep.subr.bf16.mxu0 %v524
        %556 = vmatpush1.bf16.msra.mxu0 %v523
        %557 = vmatprep.subr.bf16.mxu0 %v526
        %558 = vmatpush1.bf16.msra.mxu0 %v525
        %559 = vmatprep.subr.bf16.mxu0 %v528
        %560 = vmatpush1.bf16.msra.mxu0 %v527
        %561 = vmatprep.subr.bf16.mxu0 %v530
        %562 = vmatpush1.bf16.msra.mxu0 %v529
        %563 = vmatprep.subr.bf16.mxu0 %v532
        %564 = vmatpush1.bf16.msra.mxu0 %v531
        %565 = vmatprep.subr.bf16.mxu0 %v534
        %566 = vmatpush1.bf16.msra.mxu0 %v533
        %567 = vmatprep.subr.bf16.mxu0 %v536
        %568 = vmatpush1.bf16.msra.mxu0 %v535
        %569 = vmatprep.subr.bf16.mxu0 %v538
        %570 = vmatpush1.bf16.msra.mxu0 %v537
        %571 = vmatprep.subr.bf16.mxu0 0
        %572 = vmatpush1.bf16.msra.mxu0 0
        %573 = vmatprep.subr.bf16.mxu0 0
        %574 = vmatpush1.bf16.msra.mxu0 0
        %575 = vmatprep.subr.bf16.mxu0 0
        %576 = vmatpush1.bf16.msra.mxu0 0
        %577 = vmatprep.subr.bf16.mxu0 0
        %578 = vmatpush1.bf16.msra.mxu0 0
        %579 = vmatprep.subr.bf16.mxu0 0
        %580 = vmatpush1.bf16.msra.mxu0 0
        %581 = vmatprep.subr.bf16.mxu0 0
        %582 = vmatpush1.bf16.msra.mxu0 0
        %583 = vmatprep.subr.bf16.mxu0 0
        %584 = vmatpush1.bf16.msra.mxu0 0
        %585 = vmatprep.subr.bf16.mxu0 0
        %586 = vmatpush1.bf16.msra.mxu0 0
        %587 = vmatprep.mubr.bf16.mxu0 0
        %588 = vmatmul.mubr.bf16.gmra.mrb[0].mxu0 %v439
        %v589 = vpop.f32.mrb[0].mxu0
        %v590 = vadd.f32 %v468, %v589
        %v591 = vpop.f32.mrb[0].mxu0
        %v592 = vadd.f32 %v472, %v591
        %v593 = vpop.f32.mrb[0].mxu0
        %v594 = vadd.f32 %v468, %v593
        %v595 = vpop.f32.mrb[0].mxu0
        %v596 = vadd.f32 %v472, %v595
        %597 = vdwg.mxu0
        %v598 = vmax.f32 %v590, 0.0
        %v599 = vmax.f32 %v592, 0.0
        %v600 = vmax.f32 %v594, 0.0
        %v601 = vmax.f32 %v596, 0.0
        %v602 = vpack.c.bf16 %v600, %v598
        %v603 = vpack.c.bf16 %v601, %v599
        %s604 = smul.addr %s445, 4
        %s605 = scalar_lea.vmem [#allocation9], %s604
        %v606 = vld [vmem:[%s605] sm:$0xf]
        %v607 = vld [vmem:[%s605 + $0x4] sm:$0xf]
        %v608 = vld [vmem:[%s605 + $0x8] sm:$0xf]
        %v609 = vld [vmem:[%s605 + $0xc] sm:$0xf]
        %v610 = vld [vmem:[%s605 + $0x10] sm:$0xf]
        %v611 = vld [vmem:[%s605 + $0x14] sm:$0xf]
        %v612 = vld [vmem:[%s605 + $0x18] sm:$0xf]
        %v613 = vld [vmem:[%s605 + $0x1c] sm:$0xf]
        %v614 = vld [vmem:[%s605 + $0x20] sm:$0xf]
        %v615 = vld [vmem:[%s605 + $0x24] sm:$0xf]
        %v616 = vld [vmem:[%s605 + $0x28] sm:$0xf]
        %v617 = vld [vmem:[%s605 + $0x2c] sm:$0xf]
        %v618 = vld [vmem:[%s605 + $0x30] sm:$0xf]
        %v619 = vld [vmem:[%s605 + $0x34] sm:$0xf]
        %v620 = vld [vmem:[%s605 + $0x38] sm:$0xf]
        %v621 = vld [vmem:[%s605 + $0x3c] sm:$0xf]
        %v622 = vld [vmem:[%s605 + $0x40] sm:$0xf]
        %v623 = vld [vmem:[%s605 + $0x44] sm:$0xf]
        %v624 = vld [vmem:[%s605 + $0x48] sm:$0xf]
        %v625 = vld [vmem:[%s605 + $0x4c] sm:$0xf]
        %v626 = vld [vmem:[%s605 + $0x50] sm:$0xf]
        %v627 = vld [vmem:[%s605 + $0x54] sm:$0xf]
        %v628 = vld [vmem:[%s605 + $0x58] sm:$0xf]
        %v629 = vld [vmem:[%s605 + $0x5c] sm:$0xf]
        %v630 = vld [vmem:[%s605 + $0x60] sm:$0xf]
        %v631 = vld [vmem:[%s605 + $0x64] sm:$0xf]
        %v632 = vld [vmem:[%s605 + $0x68] sm:$0xf]
        %v633 = vld [vmem:[%s605 + $0x6c] sm:$0xf]
        %v634 = vld [vmem:[%s605 + $0x70] sm:$0xf]
        %v635 = vld [vmem:[%s605 + $0x74] sm:$0xf]
        %v636 = vld [vmem:[%s605 + $0x78] sm:$0xf]
        %v637 = vld [vmem:[%s605 + $0x7c] sm:$0xf]
        %v639 = vlaneseq
        %v640 = vshrl.u32 %v639, 7
        %v641 = vsub.s32 0, %v640
        %v642 = vrot.slane %v444, %v641
        %v676 = vunpack.c.l.b16 %v606
        %v677 = vunpack.c.l.b16 %v607
        %v678 = vunpack.c.l.b16 %v608
        %v679 = vunpack.c.l.b16 %v609
        %v680 = vunpack.c.l.b16 %v610
        %v681 = vunpack.c.l.b16 %v611
        %v682 = vunpack.c.l.b16 %v612
        %v683 = vunpack.c.l.b16 %v613
        %v684 = vunpack.c.l.b16 %v614
        %v685 = vunpack.c.l.b16 %v615
        %v686 = vunpack.c.l.b16 %v616
        %v687 = vunpack.c.l.b16 %v617
        %v688 = vunpack.c.l.b16 %v618
        %v689 = vunpack.c.l.b16 %v619
        %v690 = vunpack.c.l.b16 %v620
        %v691 = vunpack.c.l.b16 %v621
        %v692 = vunpack.c.l.b16 %v622
        %v693 = vunpack.c.l.b16 %v623
        %v694 = vunpack.c.l.b16 %v624
        %v695 = vunpack.c.l.b16 %v625
        %v696 = vunpack.c.l.b16 %v626
        %v697 = vunpack.c.l.b16 %v627
        %v698 = vunpack.c.l.b16 %v628
        %v699 = vunpack.c.l.b16 %v629
        %v700 = vunpack.c.l.b16 %v630
        %v701 = vunpack.c.l.b16 %v631
        %v702 = vunpack.c.l.b16 %v632
        %v703 = vunpack.c.l.b16 %v633
        %v704 = vunpack.c.l.b16 %v634
        %v705 = vunpack.c.l.b16 %v635
        %v706 = vunpack.c.l.b16 %v636
        %v707 = vunpack.c.l.b16 %v637
        %v708 = vpack.c.b16 %v677, %v676
        %v709 = vpack.c.b16 %v679, %v678
        %v710 = vpack.c.b16 %v681, %v680
        %v711 = vpack.c.b16 %v683, %v682
        %v712 = vpack.c.b16 %v685, %v684
        %v713 = vpack.c.b16 %v687, %v686
        %v714 = vpack.c.b16 %v689, %v688
        %v715 = vpack.c.b16 %v691, %v690
        %v716 = vpack.c.b16 %v693, %v692
        %v717 = vpack.c.b16 %v695, %v694
        %v718 = vpack.c.b16 %v697, %v696
        %v719 = vpack.c.b16 %v699, %v698
        %v720 = vpack.c.b16 %v701, %v700
        %v721 = vpack.c.b16 %v703, %v702
        %v722 = vpack.c.b16 %v705, %v704
        %v723 = vpack.c.b16 %v707, %v706
        %740 = vmatprep.subr.bf16.mxu0 0
        %741 = vmatpush1.bf16.msra.mxu0 %v708
        %742 = vmatprep.subr.bf16.mxu0 0
        %743 = vmatpush1.bf16.msra.mxu0 %v709
        %744 = vmatprep.subr.bf16.mxu0 0
        %745 = vmatpush1.bf16.msra.mxu0 %v710
        %746 = vmatprep.subr.bf16.mxu0 0
        %747 = vmatpush1.bf16.msra.mxu0 %v711
        %748 = vmatprep.subr.bf16.mxu0 0
        %749 = vmatpush1.bf16.msra.mxu0 %v712
        %750 = vmatprep.subr.bf16.mxu0 0
        %751 = vmatpush1.bf16.msra.mxu0 %v713
        %752 = vmatprep.subr.bf16.mxu0 0
        %753 = vmatpush1.bf16.msra.mxu0 %v714
        %754 = vmatprep.subr.bf16.mxu0 0
        %755 = vmatpush1.bf16.msra.mxu0 %v715
        %756 = vmatprep.subr.bf16.mxu0 0
        %757 = vmatpush1.bf16.msra.mxu0 %v716
        %758 = vmatprep.subr.bf16.mxu0 0
        %759 = vmatpush1.bf16.msra.mxu0 %v717
        %760 = vmatprep.subr.bf16.mxu0 0
        %761 = vmatpush1.bf16.msra.mxu0 %v718
        %762 = vmatprep.subr.bf16.mxu0 0
        %763 = vmatpush1.bf16.msra.mxu0 %v719
        %764 = vmatprep.subr.bf16.mxu0 0
        %765 = vmatpush1.bf16.msra.mxu0 %v720
        %766 = vmatprep.subr.bf16.mxu0 0
        %767 = vmatpush1.bf16.msra.mxu0 %v721
        %768 = vmatprep.subr.bf16.mxu0 0
        %769 = vmatpush1.bf16.msra.mxu0 %v722
        %770 = vmatprep.subr.bf16.mxu0 0
        %771 = vmatpush1.bf16.msra.mxu0 %v723
        %772 = vmatprep.mubr.bf16.mxu0 %v603
        %773 = vmatmul.mubr.bf16.gmra.mrb[0].mxu0 %v602
        %v774 = vpop.f32.mrb[0].mxu0
        %v775 = vadd.f32 %v642, %v774
        %v776 = vpop.f32.mrb[0].mxu0
        %v777 = vpop.f32.mrb[0].mxu0
        %v778 = vadd.f32 %v642, %v777
        %v779 = vpop.f32.mrb[0].mxu0
        %780 = vdwg.mxu0
        %v781 = vadd.f32 %v775, %v394
        %v782 = vadd.f32 %v778, %v395
        %783 = vst [vmem:[#allocation2] sm:$0xff] %v781
        %784 = vst [vmem:[#allocation2 + $0x8] sm:$0xff] %v782
        %p785 = scmp.eq.s32.totalorder %s29, 1
        // Predicated region
        $region77: #{tpu_custom_call.1} parent=55 // pred_check
          %p786 = pneg %p785
        $region78: #{tpu_custom_call.1} parent=55 // pred_check_branch
          %788 = sbr.rel (%p786) target = $region80
        $region79: #{tpu_custom_call.1} parent=55 // pred_region
          %v789 = vld [vmem:[%s3] sm:$0x1]
          %v790 = vld [vmem:[%s4] sm:$0x1]
          %791 = vadd.xlane.f32.xlu0 %v781
          %v792 = vpop.xlane.xlu0 %791
          %793 = vadd.xlane.f32.xlu0 %v782
          %v794 = vpop.xlane.xlu0 %793
          %v795 = vmul.f32 %v792, %v404
          %v796 = vmul.f32 %v794, %v404
          %v797 = vsub.f32 %v781, %v795
          %v798 = vsub.f32 %v782, %v796
          %v799 = vmul.f32 %v797, %v797
          %v800 = vmul.f32 %v798, %v798
          %801 = vadd.xlane.f32.xlu0 %v799
          %v802 = vpop.xlane.xlu0 %801
          %803 = vadd.xlane.f32.xlu0 %v800
          %v804 = vpop.xlane.xlu0 %803
          %v805 = vmul.f32 %v802, %v404
          %v806 = vmul.f32 %v804, %v404
          %v807 = vadd.f32 %v805, 1e-06
          %v808 = vadd.f32 %v806, 1e-06
          %v809 = vrsqrt.pop %v807
          %v810 = vrsqrt.pop %v808
          %v811 = vmul.f32 %v797, %v809
          %v812 = vmul.f32 %v798, %v810
          %v814 = vlaneseq
          %v815 = vshrl.u32 %v814, 7
          %v816 = vsub.s32 0, %v815
          %v817 = vrot.slane %v789, %v816
          %v819 = vmul.f32 %v811, %v817
          %v820 = vmul.f32 %v812, %v817
          %v822 = vlaneseq
          %v823 = vshrl.u32 %v822, 7
          %v824 = vsub.s32 0, %v823
          %v825 = vrot.slane %v790, %v824
          %v827 = vadd.f32 %v819, %v825
          %v828 = vadd.f32 %v820, %v825
          %829 = vst [vmem:[#allocation11] sm:$0xff] %v827
          %830 = vst [vmem:[#allocation11 + $0x8] sm:$0xff] %v828
        $region80: #{tpu_custom_call.1} parent=55 // pred_fallthru
          _
        // Predicated region
        $region81: #{tpu_custom_call.1} parent=55 // pred_check
          %p831 = pneg %p248
        $region82: #{tpu_custom_call.1} parent=55 // pred_check_branch
          %833 = sbr.rel (%p831) target = $region84
        $region83: #{tpu_custom_call.1} parent=55 // pred_region
          %s834 = smul.u32 2, %s28
          %s836 = ssub.s32 256, 256
          %837 = vsyncadd [#allocation5], %s836
          %s838 = smul.addr %s834, 128
          %s839 = scalar_lea.hbm %s9, %s838
          %s840 = sshll.u32 [#allocation11], 4
          %s841 = int_to_ptr.vmem [resolvable:$true] %s840
          %846 = dma.vmem_to_hbm [thread:$0]  %s841, 256, %s839, [#allocation5], 128, 128, 8
        $region84: #{tpu_custom_call.1} parent=55 // pred_fallthru
          _
        // Predicated region
        $region85: #{tpu_custom_call.1} parent=55 // pred_check
          %p847 = pneg %p248
        $region86: #{tpu_custom_call.1} parent=55 // pred_check_branch
          %849 = sbr.rel (%p847) target = $region88
        $region87: #{tpu_custom_call.1} parent=55 // pred_region
          %850 = dma.done [#allocation5], 256
        $region88: #{tpu_custom_call.1} parent=55 // pred_fallthru
          _
      $region56: #{tpu_custom_call.1} parent=5 // pred_fallthru
        _
      %p851 = scmp.le.s32.totalorder 2, %s19
      // Predicated region
      $region89: #{tpu_custom_call.1} parent=5 // pred_check
        %p852 = pneg %p851
      $region90: #{tpu_custom_call.1} parent=5 // pred_check_branch
        %854 = sbr.rel (%p852) target = $region92
      $region91: #{tpu_custom_call.1} parent=5 // pred_region
        %s855 = ssub.s32 %s19, 2
      $region92: #{tpu_custom_call.1} parent=5 // pred_fallthru
        _
    $region6: #{tpu_custom_call.1} parent=1 // loop_footer
      %s23 = sadd.s32 1, %s19
    $region7: #{tpu_custom_call.1} parent=1 // loop_footer_branch
      %18 = sbr.rel target = $region3
    $region8: #{tpu_custom_call.1} parent=1 // loop_exit
      _
    %856 = vsyncpa [#allocation4], 1
    %s857 = scalar_lea.sflag [#allocation4], 1
    %858 = vsyncpa %s857, 1
    %859 = vsyncpa [#allocation7], 1
    %860 = vsyncpa [#allocation10], 1
    %861 = vsyncpa [#allocation5], 1
    %s862 = scalar_lea.sflag [#allocation5], 1
    %863 = vsyncpa %s862, 1

</llo_original>
